<compile_context>
chip_gen: v7x
topology: tpu7x:2x2x1
jax: 0.10.0
libtpu: 0.0.40
codegen_flags: <defaults>
</compile_context>

<pallas_src>
import numpy as np
import jax
import jax.numpy as jnp
from jax.experimental import pallas as pl
from jax.experimental.pallas import tpu as pltpu

# ---------------- configuration (small, consistent with module) ----------------
B = 2          # batch
T = 8          # encoder sequence length
RNN_DIM = 32   # attention_rnn_dim
EMB_DIM = 32   # embedding_dim
ATT_DIM = 32   # attention_dim
N_FILT = 8     # attention_location_n_filters
KSIZE = 31     # module hardcodes kernel_size=31
PAD = (KSIZE - 1) // 2
FUSED_IN = RNN_DIM + 2 * T   # rows of the fused weight


def attention_kernel(q_ref, aw_ref, cum_ref, pin_ref, mask_ref, inp_ref,
                     wfused_ref, vexp_ref,
                     ctx_ref, align_ref, newcum_ref):
    f32 = jnp.float32
    q = q_ref[...]      # [B, RNN_DIM]  f32
    aw = aw_ref[...]    # [B, T]        f32  (attention_weights)
    cum = cum_ref[...]  # [B, T]        f32  (attention_weights_cum)

    # One fused MXU issue: x = [query | aw | cum]  (lane concat; XLU, cheap).
    x = jnp.concatenate([q, aw, cum], axis=-1)                       # [B, RNN+2T]
    w = wfused_ref[...].astype(f32)                                  # bf16 -> f32 upcast
    pre = jnp.dot(x, w, preferred_element_type=f32)                  # [B, T*ATT_DIM]

    # energies = v(tanh(pq + loc + processed_inputs)); v folded block-diagonally.
    # (v bias dropped: uniform additive constant cancels exactly under softmax.)
    e = jnp.tanh(pre + pin_ref[...].astype(f32))
    att = jnp.dot(e, vexp_ref[...].astype(f32), preferred_element_type=f32)  # [B, T]

    # masked_fill_ (large finite negative: fully-masked rows -> uniform, never NaN)
    att = jnp.where(mask_ref[...] > 0.5, att, -1e30)

    # softmax over T with EXACT reciprocal (no cum drift over long utterances)
    amax = jnp.max(att, axis=-1, keepdims=True)
    ex = jnp.exp(att - amax)
    align = ex / jnp.sum(ex, axis=-1, keepdims=True)
    align_ref[...] = align                                           # new attn weights

    # update_location_attention fused in-kernel
    newcum_ref[...] = cum + align

    # context = bmm(align.unsqueeze(1), inputs).squeeze(1)
    # -> VPU broadcast-mul + XLU sublane reduce (no M=1 MXU matmuls, no concat)
    ctx_ref[...] = jnp.sum(align[:, :, None] * inp_ref[...].astype(f32), axis=1)


def fold_statics(params, inputs, processed_inputs, mask):
    """Everything that does NOT change per decode step. Run ONCE per utterance
    (the folded weights only change per checkpoint); hoisted out of the step path."""
    wq, wconv, wd, vw, _vb = params          # vb dropped (cancels under softmax)
    f32, bf16 = jnp.float32, jnp.bfloat16

    # query projection with the broadcast-over-T folded in:  [RNN_DIM, T*ATT_DIM]
    wqt = jnp.tile(wq.astype(f32), (1, T))
    # conv1d(2->N_FILT, k=31, pad=15, no bias) composed with dense(N_FILT->ATT_DIM),
    # expressed as a banded/Toeplitz matrix:  W_loc[c*T + s, t*ATT_DIM + a]
    kw = jnp.einsum('kcf,fa->kca', wconv.astype(f32), wd.astype(f32))   # [K, 2, ATT]
    s_idx = jnp.arange(T)[:, None]
    t_idx = jnp.arange(T)[None, :]
    kk = s_idx - t_idx + PAD                                            # [T, T] tap index
    valid = (kk >= 0) & (kk < KSIZE)
    band = kw[jnp.clip(kk, 0, KSIZE - 1)]                               # [T, T, 2, ATT]
    band = jnp.where(valid[:, :, None, None], band, 0.0)
    wloc = jnp.transpose(band, (2, 0, 1, 3)).reshape(2 * T, T * ATT_DIM)
    # vertical stack -> single fused weight for x = [q | aw | cum]
    wfused = jnp.concatenate([wqt, wloc], axis=0).astype(bf16)          # [RNN+2T, T*ATT]
    # v projection expanded block-diagonally so energies come out directly as [B, T]
    vexp = jnp.kron(jnp.eye(T, dtype=f32), vw.astype(f32)).astype(bf16)  # [T*ATT, T]

    # per-utterance statics, stored in bf16 (DMA bytes), upcast in-kernel
    pin = processed_inputs.astype(bf16).reshape(B, T * ATT_DIM)
    inp = inputs.astype(bf16)
    mask_f = mask.astype(f32)
    return wfused, vexp, pin, inp, mask_f


@jax.jit
def attention_step(query, attention_weights, attention_weights_cum,
                   wfused, vexp, pin, inp, mask_f):
    """One decoder step: exactly one pallas_call, no other per-step XLA ops.
    Returns (context [B,E], new_attention_weights [B,T], new_attention_weights_cum [B,T])."""
    f32 = jnp.float32
    return pl.pallas_call(
        attention_kernel,
        grid=(1,),                       # whole problem in a single fused grid step
        in_specs=[
            pl.BlockSpec((B, RNN_DIM), lambda i: (0, 0)),                 # query
            pl.BlockSpec((B, T), lambda i: (0, 0)),                       # attention_weights
            pl.BlockSpec((B, T), lambda i: (0, 0)),                       # attention_weights_cum
            pl.BlockSpec((B, T * ATT_DIM), lambda i: (0, 0)),             # processed_inputs
            pl.BlockSpec((B, T), lambda i: (0, 0)),                       # mask
            pl.BlockSpec((B, T, EMB_DIM), lambda i: (0, 0, 0)),           # encoder outputs
            pl.BlockSpec((FUSED_IN, T * ATT_DIM), lambda i: (0, 0)),      # fused weight
            pl.BlockSpec((T * ATT_DIM, T), lambda i: (0, 0)),             # V expanded
        ],
        out_specs=[
            pl.BlockSpec((B, EMB_DIM), lambda i: (0, 0)),                 # context
            pl.BlockSpec((B, T), lambda i: (0, 0)),                       # alignment
            pl.BlockSpec((B, T), lambda i: (0, 0)),                       # new cum
        ],
        out_shape=(
            jax.ShapeDtypeStruct((B, EMB_DIM), f32),
            jax.ShapeDtypeStruct((B, T), f32),
            jax.ShapeDtypeStruct((B, T), f32),
        ),
        compiler_params=pltpu.CompilerParams(
            dimension_semantics=("arbitrary",)),
    )(query, attention_weights, attention_weights_cum, pin, mask_f, inp, wfused, vexp)


# ------------------------- pure-JAX reference (for check) ----------------------
def reference_forward(query, inputs, processed_inputs, mask, aw, cum, params):
    wq, wconv, wd, vw, vb = params
    pq = query @ wq                                       # [B, ATT]
    cat = jnp.stack([aw, cum], axis=1)                    # [B, 2, T]
    cat_pad = jnp.pad(cat, ((0, 0), (0, 0), (PAD, PAD)))  # [B, 2, T+2*PAD]
    conv = jnp.zeros((B, T, N_FILT), jnp.float32)
    for k in range(KSIZE):
        conv = conv + jnp.einsum('bct,cf->btf', cat_pad[:, :, k:k + T], wconv[k])
    loc = conv @ wd                                       # [B, T, ATT]
    e = jnp.tanh(pq[:, None, :] + loc + processed_inputs)
    energies = (e @ vw)[..., 0] + vb[0, 0]                # [B, T]  (bias included here)
    att = jnp.where(mask, energies, -jnp.inf)
    align = jax.nn.softmax(att, axis=-1)
    ctx = jnp.einsum('bt,bte->be', align, inputs)
    return ctx, align, cum + align


# ------------------------------------ main --------------------------------------
if __name__ == "__main__":
    key = jax.random.PRNGKey(0)
    keys = jax.random.split(key, 10)
    f32 = jnp.float32

    # deterministic "xavier-ish" parameter init (shapes from the module __init__)
    wq = (jax.random.normal(keys[0], (RNN_DIM, ATT_DIM), f32)
          * np.sqrt(2.0 / (RNN_DIM + ATT_DIM)))                    # query_layer.weight^T
    wconv = (jax.random.normal(keys[1], (KSIZE, 2, N_FILT), f32)
             * np.sqrt(2.0 / (2 * KSIZE + N_FILT)))                # Conv1d weight, [K, Cin, F]
    wd = (jax.random.normal(keys[2], (N_FILT, ATT_DIM), f32)
          * np.sqrt(2.0 / (N_FILT + ATT_DIM)))                     # location_dense.weight^T
    vw = (jax.random.normal(keys[3], (ATT_DIM, 1), f32)
          * np.sqrt(2.0 / (ATT_DIM + 1)))                          # v.weight^T
    vb = jax.random.normal(keys[4], (1, 1), f32) * 0.01            # v.bias
    params = (wq, wconv, wd, vw, vb)

    # inputs
    query = jax.random.normal(keys[5], (B, RNN_DIM), f32)          # attention_hidden_state
    inputs = jax.random.normal(keys[6], (B, T, EMB_DIM), f32)      # encoder outputs
    processed_inputs = jax.random.normal(keys[7], (B, T, ATT_DIM), f32)
    # recurrent state (normally zeros after init_states; random for a stronger test)
    aw = jax.nn.softmax(jax.random.normal(keys[8], (B, T), f32), axis=-1)
    cum = jnp.abs(jax.random.normal(keys[9], (B, T), f32))
    mask = jnp.ones((B, T), bool).at[1, T - 2:].set(False)         # mask tail of batch 1

    # ---- per-utterance / per-checkpoint folding: runs ONCE, outside the step path ----
    wfused, vexp, pin, inp, mask_f = fold_statics(params, inputs, processed_inputs, mask)

    # ---- per-decode-step: exactly one pallas_call ----
    ctx, align, newcum = attention_step(query, aw, cum, wfused, vexp, pin, inp, mask_f)
    jax.block_until_ready((ctx, align, newcum))

    ctx_r, align_r, newcum_r = reference_forward(query, inputs, processed_inputs,
                                                 mask, aw, cum, params)
    # tolerance reflects the bf16 storage of the folded weights / static tensors
    # (softmax itself is exact now — approx reciprocal removed)
    np.testing.assert_allclose(np.asarray(ctx), np.asarray(ctx_r), atol=2e-2, rtol=2e-2)
    np.testing.assert_allclose(np.asarray(align), np.asarray(align_r), atol=2e-2, rtol=2e-2)
    np.testing.assert_allclose(np.asarray(newcum), np.asarray(newcum_r), atol=2e-2, rtol=2e-2)

    print("KERNEL_OK")
</pallas_src>

<mosaic_0001>
module attributes {stable_mosaic.version = 11 : i64} {
  func.func @attention_kernel(%arg0: i32, %arg1: memref<2x32xf32, #tpu.memory_space<vmem>>, %arg2: memref<2x8xf32, #tpu.memory_space<vmem>>, %arg3: memref<2x8xf32, #tpu.memory_space<vmem>>, %arg4: memref<2x256xbf16, #tpu.memory_space<vmem>>, %arg5: memref<2x8xf32, #tpu.memory_space<vmem>>, %arg6: memref<2x8x32xbf16, #tpu.memory_space<vmem>>, %arg7: memref<48x256xbf16, #tpu.memory_space<vmem>>, %arg8: memref<256x8xbf16, #tpu.memory_space<vmem>>, %arg9: memref<2x32xf32, #tpu.memory_space<vmem>>, %arg10: memref<2x8xf32, #tpu.memory_space<vmem>>, %arg11: memref<2x8xf32, #tpu.memory_space<vmem>>) attributes {dimension_semantics = [#tpu.dimension_semantics<arbitrary>], iteration_bounds = array<i64: 1>, scalar_prefetch = 0 : i64, scratch_operands = 0 : i64, tpu.core_type = #tpu.core_type<tc>, window_params = [{pipeline_mode = #tpu.pipeline_mode<synchronous>, transform_indices = @transform_0, window_bounds = array<i64: 2, 32>}, {pipeline_mode = #tpu.pipeline_mode<synchronous>, transform_indices = @transform_1, window_bounds = array<i64: 2, 8>}, {pipeline_mode = #tpu.pipeline_mode<synchronous>, transform_indices = @transform_2, window_bounds = array<i64: 2, 8>}, {pipeline_mode = #tpu.pipeline_mode<synchronous>, transform_indices = @transform_3, window_bounds = array<i64: 2, 256>}, {pipeline_mode = #tpu.pipeline_mode<synchronous>, transform_indices = @transform_4, window_bounds = array<i64: 2, 8>}, {pipeline_mode = #tpu.pipeline_mode<synchronous>, transform_indices = @transform_5, window_bounds = array<i64: 2, 8, 32>}, {pipeline_mode = #tpu.pipeline_mode<synchronous>, transform_indices = @transform_6, window_bounds = array<i64: 48, 256>}, {pipeline_mode = #tpu.pipeline_mode<synchronous>, transform_indices = @transform_7, window_bounds = array<i64: 256, 8>}, {pipeline_mode = #tpu.pipeline_mode<synchronous>, transform_indices = @transform_8, window_bounds = array<i64: 2, 32>}, {pipeline_mode = #tpu.pipeline_mode<synchronous>, transform_indices = @transform_9, window_bounds = array<i64: 2, 8>}, {pipeline_mode = #tpu.pipeline_mode<synchronous>, transform_indices = @transform_10, window_bounds = array<i64: 2, 8>}]} {
    %c0 = arith.constant 0 : index
    %c0_0 = arith.constant 0 : index
    %0 = vector.load %arg1[%c0, %c0_0] : memref<2x32xf32, #tpu.memory_space<vmem>>, vector<2x32xf32>
    %c0_1 = arith.constant 0 : index
    %c0_2 = arith.constant 0 : index
    %1 = vector.load %arg2[%c0_1, %c0_2] : memref<2x8xf32, #tpu.memory_space<vmem>>, vector<2x8xf32>
    %c0_3 = arith.constant 0 : index
    %c0_4 = arith.constant 0 : index
    %2 = vector.load %arg3[%c0_3, %c0_4] : memref<2x8xf32, #tpu.memory_space<vmem>>, vector<2x8xf32>
    %3 = tpu.concatenate %0, %1, %2 in 1 : vector<2x32xf32>, vector<2x8xf32>, vector<2x8xf32> -> vector<2x48xf32>
    %c0_5 = arith.constant 0 : index
    %c0_6 = arith.constant 0 : index
    %4 = vector.load %arg7[%c0_5, %c0_6] : memref<48x256xbf16, #tpu.memory_space<vmem>>, vector<48x256xbf16>
    %5 = arith.extf %4 : vector<48x256xbf16> to vector<48x256xf32>
    %cst = arith.constant dense<0.000000e+00> : vector<2x256xf32>
    %6 = tpu.matmul %3, %5, %cst {dimension_numbers = #tpu.dot_dimension_numbers<[1], [0], [0], [1], [0, 0, 1, 1], [], []>} : vector<2x48xf32>, vector<48x256xf32>, vector<2x256xf32> -> vector<2x256xf32>
    %c0_7 = arith.constant 0 : index
    %c0_8 = arith.constant 0 : index
    %7 = vector.load %arg4[%c0_7, %c0_8] : memref<2x256xbf16, #tpu.memory_space<vmem>>, vector<2x256xbf16>
    %8 = arith.extf %7 : vector<2x256xbf16> to vector<2x256xf32>
    %9 = arith.addf %6, %8 : vector<2x256xf32>
    %10 = math.tanh %9 : vector<2x256xf32>
    %c0_9 = arith.constant 0 : index
    %c0_10 = arith.constant 0 : index
    %11 = vector.load %arg8[%c0_9, %c0_10] : memref<256x8xbf16, #tpu.memory_space<vmem>>, vector<256x8xbf16>
    %12 = arith.extf %11 : vector<256x8xbf16> to vector<256x8xf32>
    %cst_11 = arith.constant dense<0.000000e+00> : vector<2x8xf32>
    %13 = tpu.matmul %10, %12, %cst_11 {dimension_numbers = #tpu.dot_dimension_numbers<[1], [0], [0], [1], [0, 0, 1, 1], [], []>} : vector<2x256xf32>, vector<256x8xf32>, vector<2x8xf32> -> vector<2x8xf32>
    %c0_12 = arith.constant 0 : index
    %c0_13 = arith.constant 0 : index
    %14 = vector.load %arg5[%c0_12, %c0_13] : memref<2x8xf32, #tpu.memory_space<vmem>>, vector<2x8xf32>
    %cst_14 = arith.constant 5.000000e-01 : f32
    %15 = vector.broadcast %cst_14 : f32 to vector<2x8xf32>
    %16 = arith.cmpf ogt, %14, %15 : vector<2x8xf32>
    %cst_15 = arith.constant -1.000000e+30 : f32
    %17 = vector.broadcast %cst_15 : f32 to vector<2x8xf32>
    %18 = arith.select %16, %13, %17 : vector<2x8xi1>, vector<2x8xf32>
    %cst_16 = arith.constant dense<0xFF800000> : vector<2xf32>
    %19 = vector.multi_reduction <maximumf>, %18, %cst_16 [1] : vector<2x8xf32> to vector<2xf32>
    %20 = vector.shape_cast %19 : vector<2xf32> to vector<2x1xf32>
    %21 = vector.broadcast %20 : vector<2x1xf32> to vector<2x8xf32>
    %22 = arith.subf %18, %21 : vector<2x8xf32>
    %23 = math.exp %22 : vector<2x8xf32>
    %cst_17 = arith.constant dense<0.000000e+00> : vector<2xf32>
    %24 = vector.multi_reduction <add>, %23, %cst_17 [1] : vector<2x8xf32> to vector<2xf32>
    %25 = vector.shape_cast %24 : vector<2xf32> to vector<2x1xf32>
    %26 = vector.broadcast %25 : vector<2x1xf32> to vector<2x8xf32>
    %27 = arith.divf %23, %26 : vector<2x8xf32>
    %c0_18 = arith.constant 0 : index
    %c0_19 = arith.constant 0 : index
    %28 = vector.load %arg10[%c0_18, %c0_19] : memref<2x8xf32, #tpu.memory_space<vmem>>, vector<2x8xf32>
    tpu.vector_store %arg10[%c0_18, %c0_19], %27 {strides = array<i32>} : memref<2x8xf32, #tpu.memory_space<vmem>>, vector<2x8xf32>,
    %29 = arith.addf %2, %27 : vector<2x8xf32>
    %c0_20 = arith.constant 0 : index
    %c0_21 = arith.constant 0 : index
    %30 = vector.load %arg11[%c0_20, %c0_21] : memref<2x8xf32, #tpu.memory_space<vmem>>, vector<2x8xf32>
    tpu.vector_store %arg11[%c0_20, %c0_21], %29 {strides = array<i32>} : memref<2x8xf32, #tpu.memory_space<vmem>>, vector<2x8xf32>,
    %31 = vector.shape_cast %27 : vector<2x8xf32> to vector<2x8x1xf32>
    %c0_22 = arith.constant 0 : index
    %c0_23 = arith.constant 0 : index
    %c0_24 = arith.constant 0 : index
    %32 = vector.load %arg6[%c0_22, %c0_23, %c0_24] : memref<2x8x32xbf16, #tpu.memory_space<vmem>>, vector<2x8x32xbf16>
    %33 = arith.extf %32 : vector<2x8x32xbf16> to vector<2x8x32xf32>
    %34 = vector.broadcast %31 : vector<2x8x1xf32> to vector<2x8x32xf32>
    %35 = arith.mulf %34, %33 : vector<2x8x32xf32>
    %cst_25 = arith.constant dense<0.000000e+00> : vector<2x32xf32>
    %36 = vector.multi_reduction <add>, %35, %cst_25 [1] : vector<2x8x32xf32> to vector<2x32xf32>
    %c0_26 = arith.constant 0 : index
    %c0_27 = arith.constant 0 : index
    %37 = vector.load %arg9[%c0_26, %c0_27] : memref<2x32xf32, #tpu.memory_space<vmem>>, vector<2x32xf32>
    tpu.vector_store %arg9[%c0_26, %c0_27], %36 {strides = array<i32>} : memref<2x32xf32, #tpu.memory_space<vmem>>, vector<2x32xf32>,
    return
  }
  func.func @transform_0(%arg0: i32) -> (i32, i32) {
    %c0_i32 = arith.constant 0 : i32
    %c0_i32_0 = arith.constant 0 : i32
    %c0_i32_1 = arith.constant 0 : i32
    return %c0_i32, %c0_i32_0 : i32, i32
  }
  func.func @transform_1(%arg0: i32) -> (i32, i32) {
    %c0_i32 = arith.constant 0 : i32
    %c0_i32_0 = arith.constant 0 : i32
    %c0_i32_1 = arith.constant 0 : i32
    return %c0_i32, %c0_i32_0 : i32, i32
  }
  func.func @transform_2(%arg0: i32) -> (i32, i32) {
    %c0_i32 = arith.constant 0 : i32
    %c0_i32_0 = arith.constant 0 : i32
    %c0_i32_1 = arith.constant 0 : i32
    return %c0_i32, %c0_i32_0 : i32, i32
  }
  func.func @transform_3(%arg0: i32) -> (i32, i32) {
    %c0_i32 = arith.constant 0 : i32
    %c0_i32_0 = arith.constant 0 : i32
    %c0_i32_1 = arith.constant 0 : i32
    return %c0_i32, %c0_i32_0 : i32, i32
  }
  func.func @transform_4(%arg0: i32) -> (i32, i32) {
    %c0_i32 = arith.constant 0 : i32
    %c0_i32_0 = arith.constant 0 : i32
    %c0_i32_1 = arith.constant 0 : i32
    return %c0_i32, %c0_i32_0 : i32, i32
  }
  func.func @transform_5(%arg0: i32) -> (i32, i32, i32) {
    %c0_i32 = arith.constant 0 : i32
    %c0_i32_0 = arith.constant 0 : i32
    %c0_i32_1 = arith.constant 0 : i32
    %c0_i32_2 = arith.constant 0 : i32
    return %c0_i32, %c0_i32_0, %c0_i32_1 : i32, i32, i32
  }
  func.func @transform_6(%arg0: i32) -> (i32, i32) {
    %c0_i32 = arith.constant 0 : i32
    %c0_i32_0 = arith.constant 0 : i32
    %c0_i32_1 = arith.constant 0 : i32
    return %c0_i32, %c0_i32_0 : i32, i32
  }
  func.func @transform_7(%arg0: i32) -> (i32, i32) {
    %c0_i32 = arith.constant 0 : i32
    %c0_i32_0 = arith.constant 0 : i32
    %c0_i32_1 = arith.constant 0 : i32
    return %c0_i32, %c0_i32_0 : i32, i32
  }
  func.func @transform_8(%arg0: i32) -> (i32, i32) {
    %c0_i32 = arith.constant 0 : i32
    %c0_i32_0 = arith.constant 0 : i32
    %c0_i32_1 = arith.constant 0 : i32
    return %c0_i32, %c0_i32_0 : i32, i32
  }
  func.func @transform_9(%arg0: i32) -> (i32, i32) {
    %c0_i32 = arith.constant 0 : i32
    %c0_i32_0 = arith.constant 0 : i32
    %c0_i32_1 = arith.constant 0 : i32
    return %c0_i32, %c0_i32_0 : i32, i32
  }
  func.func @transform_10(%arg0: i32) -> (i32, i32) {
    %c0_i32 = arith.constant 0 : i32
    %c0_i32_0 = arith.constant 0 : i32
    %c0_i32_1 = arith.constant 0 : i32
    return %c0_i32, %c0_i32_0 : i32, i32
  }
}

</mosaic_0001>

<llo_original>
// kernel: attention_step.1
$region0: #{attention_step.1}
  #allocation0 [shape = 'u32[]', space=smem, size = 0x4, offset = 0x4, fixed_abs, tag = 'smem constant byte address 0x4 - core index']
  #allocation1 [shape = 'u32[144,128]{1,0:T(1,128)}', space=vmem, size = 0x12000, scoped, tag = 'internal scratch']
  %s0 = inlined_call_operand.vmem [shape: f32[2,32], index: 0, kind: input, shape index: {}]
  %s1 = inlined_call_operand.vmem [shape: f32[2,8], index: 1, kind: input, shape index: {}]
  %s2 = inlined_call_operand.vmem [shape: f32[2,8], index: 2, kind: input, shape index: {}]
  %s3 = inlined_call_operand.vmem [shape: bf16[2,256], index: 3, kind: input, shape index: {}]
  %s4 = inlined_call_operand.vmem [shape: f32[2,8], index: 4, kind: input, shape index: {}]
  %s5 = inlined_call_operand.vmem [shape: bf16[2,8,32], index: 5, kind: input, shape index: {}]
  %s6 = inlined_call_operand.vmem [shape: bf16[48,256], index: 6, kind: input, shape index: {}]
  %s7 = inlined_call_operand.vmem [shape: bf16[256,8], index: 7, kind: input, shape index: {}]
  %s8 = inlined_call_operand.hbm [shape: f32[2,32], index: 8, kind: output, shape index: {0}]
  %s9 = inlined_call_operand.hbm [shape: f32[2,8], index: 9, kind: output, shape index: {1}]
  %s10 = inlined_call_operand.hbm [shape: f32[2,8], index: 10, kind: output, shape index: {2}]
  %11 = xla_tuple %s8, %s9, %s10
  %s12 = sld [smem:[#allocation0]]
  $region58: #{attention_step.1} parent=0
    _
  %s14 = ssub.s32 1, %s12
  %s15 = scalar_select 0, %s14, %s12
  $region1: #{attention_step.1} parent=0
    #allocation2 [shape = 'u8[1024]{0}', space=vmem, size = 0x400, scoped, tag = 'output window, operand 0, single buffered']
    #allocation3 [shape = 's32[1]{0}', space=sflag, size = 0x4, scoped, tag = 'scoped memory for attention_step.1']
    #allocation4 [shape = 'u8[1024]{0}', space=vmem, size = 0x400, scoped, tag = 'output window, operand 1, single buffered']
    #allocation5 [shape = 's32[1]{0}', space=sflag, size = 0x4, scoped, tag = 'scoped memory for attention_step.1']
    #allocation6 [shape = 'u8[1024]{0}', space=vmem, size = 0x400, scoped, tag = 'output window, operand 2, single buffered']
    %16 = vsyncpa [#allocation3], 0
    %17 = vsyncpa [#allocation5], 0
    // Predicated region
    $region2: #{attention_step.1} parent=1 // pred_check
      _
    $region3: #{attention_step.1} parent=1 // pred_check_branch
      %19 = sbr.rel (0) target = $region5
    $region4: #{attention_step.1} parent=1 // pred_region
      _
    $region5: #{attention_step.1} parent=1 // pred_fallthru
      _
    // Predicated region
    $region6: #{attention_step.1} parent=1 // pred_check
      _
    $region7: #{attention_step.1} parent=1 // pred_check_branch
      %21 = sbr.rel (0) target = $region9
    $region8: #{attention_step.1} parent=1 // pred_region
      _
    $region9: #{attention_step.1} parent=1 // pred_fallthru
      _
    // Predicated region
    $region10: #{attention_step.1} parent=1 // pred_check
      _
    $region11: #{attention_step.1} parent=1 // pred_check_branch
      %23 = sbr.rel (0) target = $region13
    $region12: #{attention_step.1} parent=1 // pred_region
      _
    $region13: #{attention_step.1} parent=1 // pred_fallthru
      _
    // Predicated region
    $region14: #{attention_step.1} parent=1 // pred_check
      _
    $region15: #{attention_step.1} parent=1 // pred_check_branch
      %25 = sbr.rel (0) target = $region17
    $region16: #{attention_step.1} parent=1 // pred_region
      _
    $region17: #{attention_step.1} parent=1 // pred_fallthru
      _
    // Predicated region
    $region18: #{attention_step.1} parent=1 // pred_check
      _
    $region19: #{attention_step.1} parent=1 // pred_check_branch
      %27 = sbr.rel (0) target = $region21
    $region20: #{attention_step.1} parent=1 // pred_region
      _
    $region21: #{attention_step.1} parent=1 // pred_fallthru
      _
    // Predicated region
    $region22: #{attention_step.1} parent=1 // pred_check
      _
    $region23: #{attention_step.1} parent=1 // pred_check_branch
      %29 = sbr.rel (0) target = $region25
    $region24: #{attention_step.1} parent=1 // pred_region
      _
    $region25: #{attention_step.1} parent=1 // pred_fallthru
      _
    // Predicated region
    $region26: #{attention_step.1} parent=1 // pred_check
      _
    $region27: #{attention_step.1} parent=1 // pred_check_branch
      %31 = sbr.rel (0) target = $region29
    $region28: #{attention_step.1} parent=1 // pred_region
      _
    $region29: #{attention_step.1} parent=1 // pred_fallthru
      _
    // Predicated region
    $region30: #{attention_step.1} parent=1 // pred_check
      _
    $region31: #{attention_step.1} parent=1 // pred_check_branch
      %33 = sbr.rel (0) target = $region33
    $region32: #{attention_step.1} parent=1 // pred_region
      _
    $region33: #{attention_step.1} parent=1 // pred_fallthru
      _
    %v34 = vld [vmem:[%s0] sm:$0x3]
    %v35 = vld [vmem:[%s1] sm:$0x3]
    %v36 = vld [vmem:[%s2] sm:$0x3]
    %38 = vrot.lane.b32.xlu0 %v35, 32
    %v39 = vpop.permute.xlu0 %38
    %42 = vrot.lane.b32.xlu0 %v36, 40
    %v43 = vpop.permute.xlu0 %42
    %vm45 = vcmask 261120
    %v46 = vsel %vm45, %v34, %v39
    %vm47 = vcmask 326656
    %v48 = vsel %vm47, %v46, %v43
    %v49 = vld [vmem:[%s6] sm:$0xff]
    %v50 = vld [vmem:[%s6 + $0x8] sm:$0xff]
    %v51 = vld [vmem:[%s6 + $0x10] sm:$0xff]
    %v52 = vld [vmem:[%s6 + $0x18] sm:$0xff]
    %v53 = vld [vmem:[%s6 + $0x20] sm:$0xff]
    %v54 = vld [vmem:[%s6 + $0x28] sm:$0xff]
    %v55 = vunpack.c.l.bf16 %v49
    %v56 = vunpack.c.h.bf16 %v49
    %v57 = vunpack.c.l.bf16 %v50
    %v58 = vunpack.c.h.bf16 %v50
    %v59 = vunpack.c.l.bf16 %v51
    %v60 = vunpack.c.h.bf16 %v51
    %v61 = vunpack.c.l.bf16 %v52
    %v62 = vunpack.c.h.bf16 %v52
    %v63 = vunpack.c.l.bf16 %v53
    %v64 = vunpack.c.h.bf16 %v53
    %v65 = vunpack.c.l.bf16 %v54
    %v66 = vunpack.c.h.bf16 %v54
    %v67 = vld [vmem:[%s3] sm:$0x3]
    %v68 = vunpack.c.l.bf16 %v67
    %v71 = vunpack.c.l.s4 1983009808
    %v72 = vunpack.c.0.s8 %v71
    %v73 = vlaneseq
    %v74 = vshrl.u32 %v73, 7
    %v75 = vsub.s32 %v72, %v74
    %v76 = vrot.slane %v68, %v75
    %v77 = vcombine.high %v76, %v76
    %vm80 = vcmask 392192
    %v82 = vsel %vm80, %v48, 0
    %84 = vmatprep.subr.mxu0 %v56
    %85 = vmatpush1.msra.mxu0 %v55
    %86 = vmatprep.subr.mxu0 %v58
    %87 = vmatpush1.msra.mxu0 %v57
    %88 = vmatprep.subr.mxu0 %v60
    %89 = vmatpush1.msra.mxu0 %v59
    %90 = vmatprep.subr.mxu0 %v62
    %91 = vmatpush1.msra.mxu0 %v61
    %92 = vmatprep.subr.mxu0 %v64
    %93 = vmatpush1.msra.mxu0 %v63
    %94 = vmatprep.subr.mxu0 %v66
    %95 = vmatpush1.msra.mxu0 %v65
    %96 = vmatprep.subr.mxu0 0.0
    %97 = vmatpush1.msra.mxu0 0.0
    %98 = vmatprep.subr.mxu0 0.0
    %99 = vmatpush1.msra.mxu0 0.0
    %100 = vmatprep.subr.mxu0 0.0
    %101 = vmatpush1.msra.mxu0 0.0
    %102 = vmatprep.subr.mxu0 0.0
    %103 = vmatpush1.msra.mxu0 0.0
    %104 = vmatprep.subr.mxu0 0.0
    %105 = vmatpush1.msra.mxu0 0.0
    %106 = vmatprep.subr.mxu0 0.0
    %107 = vmatpush1.msra.mxu0 0.0
    %108 = vmatprep.subr.mxu0 0.0
    %109 = vmatpush1.msra.mxu0 0.0
    %110 = vmatprep.subr.mxu0 0.0
    %111 = vmatpush1.msra.mxu0 0.0
    %112 = vmatprep.subr.mxu0 0.0
    %113 = vmatpush1.msra.mxu0 0.0
    %114 = vmatprep.subr.mxu0 0.0
    %115 = vmatpush1.msra.mxu0 0.0
    %116 = vmatprep.subr.mxu0 0.0
    %117 = vmatpush1.msra.mxu0 0.0
    %118 = vmatprep.subr.mxu0 0.0
    %119 = vmatpush1.msra.mxu0 0.0
    %120 = vmatprep.subr.mxu0 0.0
    %121 = vmatpush1.msra.mxu0 0.0
    %122 = vmatprep.subr.mxu0 0.0
    %123 = vmatpush1.msra.mxu0 0.0
    %124 = vmatprep.subr.mxu0 0.0
    %125 = vmatpush1.msra.mxu0 0.0
    %126 = vmatprep.subr.mxu0 0.0
    %127 = vmatpush1.msra.mxu0 0.0
    %128 = vmatprep.subr.mxu0 0.0
    %129 = vmatpush1.msra.mxu0 0.0
    %130 = vmatprep.subr.mxu0 0.0
    %131 = vmatpush1.msra.mxu0 0.0
    %132 = vmatprep.subr.mxu0 0.0
    %133 = vmatpush1.msra.mxu0 0.0
    %134 = vmatprep.subr.mxu0 0.0
    %135 = vmatpush1.msra.mxu0 0.0
    %136 = vmatprep.subr.mxu0 0.0
    %137 = vmatpush1.msra.mxu0 0.0
    %138 = vmatprep.subr.mxu0 0.0
    %139 = vmatpush1.msra.mxu0 0.0
    %140 = vmatprep.subr.mxu0 0.0
    %141 = vmatpush1.msra.mxu0 0.0
    %142 = vmatprep.subr.mxu0 0.0
    %143 = vmatpush1.msra.mxu0 0.0
    %144 = vmatprep.subr.mxu0 0.0
    %145 = vmatpush1.msra.mxu0 0.0
    %146 = vmatprep.subr.mxu0 0.0
    %147 = vmatpush1.msra.mxu0 0.0
    %148 = vmatprep.mubr.f32.mxu0 0.0
    %149 = vmatmul.mubr.f32.gmra.mrb[0].mxu0 %v82
    %v150 = vpop.f32.mrb[0].mxu0
    %v151 = vadd.f32 %v76, %v150
    %v152 = vpop.f32.mrb[0].mxu0
    %v153 = vadd.f32 %v77, %v152
    %154 = vdwg.mxu0
    %v155 = vtanh.pop %v151
    %v156 = vtanh.pop %v153
    %v157 = vld [vmem:[%s7] sm:$0xf]
    %v158 = vld [vmem:[%s7 + $0x4] sm:$0xf]
    %v159 = vld [vmem:[%s7 + $0x8] sm:$0xf]
    %v160 = vld [vmem:[%s7 + $0xc] sm:$0xf]
    %v161 = vld [vmem:[%s7 + $0x10] sm:$0xf]
    %v162 = vld [vmem:[%s7 + $0x14] sm:$0xf]
    %v163 = vld [vmem:[%s7 + $0x18] sm:$0xf]
    %v164 = vld [vmem:[%s7 + $0x1c] sm:$0xf]
    %v165 = vld [vmem:[%s7 + $0x20] sm:$0xf]
    %v166 = vld [vmem:[%s7 + $0x24] sm:$0xf]
    %v167 = vld [vmem:[%s7 + $0x28] sm:$0xf]
    %v168 = vld [vmem:[%s7 + $0x2c] sm:$0xf]
    %v169 = vld [vmem:[%s7 + $0x30] sm:$0xf]
    %v170 = vld [vmem:[%s7 + $0x34] sm:$0xf]
    %v171 = vld [vmem:[%s7 + $0x38] sm:$0xf]
    %v172 = vld [vmem:[%s7 + $0x3c] sm:$0xf]
    %v173 = vld [vmem:[%s7 + $0x40] sm:$0xf]
    %v174 = vld [vmem:[%s7 + $0x44] sm:$0xf]
    %v175 = vld [vmem:[%s7 + $0x48] sm:$0xf]
    %v176 = vld [vmem:[%s7 + $0x4c] sm:$0xf]
    %v177 = vld [vmem:[%s7 + $0x50] sm:$0xf]
    %v178 = vld [vmem:[%s7 + $0x54] sm:$0xf]
    %v179 = vld [vmem:[%s7 + $0x58] sm:$0xf]
    %v180 = vld [vmem:[%s7 + $0x5c] sm:$0xf]
    %v181 = vld [vmem:[%s7 + $0x60] sm:$0xf]
    %v182 = vld [vmem:[%s7 + $0x64] sm:$0xf]
    %v183 = vld [vmem:[%s7 + $0x68] sm:$0xf]
    %v184 = vld [vmem:[%s7 + $0x6c] sm:$0xf]
    %v185 = vld [vmem:[%s7 + $0x70] sm:$0xf]
    %v186 = vld [vmem:[%s7 + $0x74] sm:$0xf]
    %v187 = vld [vmem:[%s7 + $0x78] sm:$0xf]
    %v188 = vld [vmem:[%s7 + $0x7c] sm:$0xf]
    %v189 = vunpack.c.l.bf16 %v157
    %v190 = vunpack.c.l.bf16 %v158
    %v191 = vunpack.c.l.bf16 %v159
    %v192 = vunpack.c.l.bf16 %v160
    %v193 = vunpack.c.l.bf16 %v161
    %v194 = vunpack.c.l.bf16 %v162
    %v195 = vunpack.c.l.bf16 %v163
    %v196 = vunpack.c.l.bf16 %v164
    %v197 = vunpack.c.l.bf16 %v165
    %v198 = vunpack.c.l.bf16 %v166
    %v199 = vunpack.c.l.bf16 %v167
    %v200 = vunpack.c.l.bf16 %v168
    %v201 = vunpack.c.l.bf16 %v169
    %v202 = vunpack.c.l.bf16 %v170
    %v203 = vunpack.c.l.bf16 %v171
    %v204 = vunpack.c.l.bf16 %v172
    %v205 = vunpack.c.l.bf16 %v173
    %v206 = vunpack.c.l.bf16 %v174
    %v207 = vunpack.c.l.bf16 %v175
    %v208 = vunpack.c.l.bf16 %v176
    %v209 = vunpack.c.l.bf16 %v177
    %v210 = vunpack.c.l.bf16 %v178
    %v211 = vunpack.c.l.bf16 %v179
    %v212 = vunpack.c.l.bf16 %v180
    %v213 = vunpack.c.l.bf16 %v181
    %v214 = vunpack.c.l.bf16 %v182
    %v215 = vunpack.c.l.bf16 %v183
    %v216 = vunpack.c.l.bf16 %v184
    %v217 = vunpack.c.l.bf16 %v185
    %v218 = vunpack.c.l.bf16 %v186
    %v219 = vunpack.c.l.bf16 %v187
    %v220 = vunpack.c.l.bf16 %v188
    %221 = vmatprep.subr.mxu0 0.0
    %222 = vmatpush1.msra.mxu0 %v189
    %223 = vmatprep.subr.mxu0 0.0
    %224 = vmatpush1.msra.mxu0 %v190
    %225 = vmatprep.subr.mxu0 0.0
    %226 = vmatpush1.msra.mxu0 %v191
    %227 = vmatprep.subr.mxu0 0.0
    %228 = vmatpush1.msra.mxu0 %v192
    %229 = vmatprep.subr.mxu0 0.0
    %230 = vmatpush1.msra.mxu0 %v193
    %231 = vmatprep.subr.mxu0 0.0
    %232 = vmatpush1.msra.mxu0 %v194
    %233 = vmatprep.subr.mxu0 0.0
    %234 = vmatpush1.msra.mxu0 %v195
    %235 = vmatprep.subr.mxu0 0.0
    %236 = vmatpush1.msra.mxu0 %v196
    %237 = vmatprep.subr.mxu0 0.0
    %238 = vmatpush1.msra.mxu0 %v197
    %239 = vmatprep.subr.mxu0 0.0
    %240 = vmatpush1.msra.mxu0 %v198
    %241 = vmatprep.subr.mxu0 0.0
    %242 = vmatpush1.msra.mxu0 %v199
    %243 = vmatprep.subr.mxu0 0.0
    %244 = vmatpush1.msra.mxu0 %v200
    %245 = vmatprep.subr.mxu0 0.0
    %246 = vmatpush1.msra.mxu0 %v201
    %247 = vmatprep.subr.mxu0 0.0
    %248 = vmatpush1.msra.mxu0 %v202
    %249 = vmatprep.subr.mxu0 0.0
    %250 = vmatpush1.msra.mxu0 %v203
    %251 = vmatprep.subr.mxu0 0.0
    %252 = vmatpush1.msra.mxu0 %v204
    %253 = vmatprep.subr.mxu0 0.0
    %254 = vmatpush1.msra.mxu0 %v205
    %255 = vmatprep.subr.mxu0 0.0
    %256 = vmatpush1.msra.mxu0 %v206
    %257 = vmatprep.subr.mxu0 0.0
    %258 = vmatpush1.msra.mxu0 %v207
    %259 = vmatprep.subr.mxu0 0.0
    %260 = vmatpush1.msra.mxu0 %v208
    %261 = vmatprep.subr.mxu0 0.0
    %262 = vmatpush1.msra.mxu0 %v209
    %263 = vmatprep.subr.mxu0 0.0
    %264 = vmatpush1.msra.mxu0 %v210
    %265 = vmatprep.subr.mxu0 0.0
    %266 = vmatpush1.msra.mxu0 %v211
    %267 = vmatprep.subr.mxu0 0.0
    %268 = vmatpush1.msra.mxu0 %v212
    %269 = vmatprep.subr.mxu0 0.0
    %270 = vmatpush1.msra.mxu0 %v213
    %271 = vmatprep.subr.mxu0 0.0
    %272 = vmatpush1.msra.mxu0 %v214
    %273 = vmatprep.subr.mxu0 0.0
    %274 = vmatpush1.msra.mxu0 %v215
    %275 = vmatprep.subr.mxu0 0.0
    %276 = vmatpush1.msra.mxu0 %v216
    %277 = vmatprep.subr.mxu0 0.0
    %278 = vmatpush1.msra.mxu0 %v217
    %279 = vmatprep.subr.mxu0 0.0
    %280 = vmatpush1.msra.mxu0 %v218
    %281 = vmatprep.subr.mxu0 0.0
    %282 = vmatpush1.msra.mxu0 %v219
    %283 = vmatprep.subr.mxu0 0.0
    %284 = vmatpush1.msra.mxu0 %v220
    %285 = vmatprep.mubr.f32.mxu0 %v156
    %286 = vmatmul.mubr.f32.gmra.mrb[0].mxu0 %v155
    %v287 = vpop.f32.mrb[0].mxu0
    %v288 = vadd.f32 0.0, %v287
    %v289 = vpop.f32.mrb[0].mxu0
    %290 = vdwg.mxu0
    %v291 = vld [vmem:[%s4] sm:$0x3]
    %vm292 = vcmp.gt.f32.partialorder %v291, 0.5
    %v293 = vsel %vm292, %v288, -1e+30
    %vm294 = vcmask 58368
    %v295 = vsel %vm294, %v293, -inf
    %296 = vmax.xlane.f32.xlu0 %v295
    %v297 = vpop.xlane.xlu0 %296
    %v298 = vsub.f32 %v293, %v297
    %v299 = vmul.f32 %v298, 1.442695
    %v300 = vpow.pop %v299
    %v301 = vsel %vm294, %v300, 0.0
    %302 = vadd.xlane.f32.xlu0 %v301
    %v303 = vpop.xlane.xlu0 %302
    %v304 = vrcp.pop %v303
    %v305 = vmul.f32 %v300, %v304
    %306 = vst.msk [vmem:[#allocation4] sm:$0x3] %vm294, %v305
    %v307 = vadd.f32 %v36, %v305
    %308 = vst.msk [vmem:[#allocation6] sm:$0x3] %vm294, %v307
    %v309 = vlaneseq
    %v310 = vshrl.u32 %v309, 7
    %v311 = vsub.s32 0, %v310
    %v312 = vrot.slane %v305, %v311
    %314 = vbcast.lane.b32.xlu0 %v312, 256
    %v315 = vpop.permute.xlu0 %314
    %v316 = vlaneseq
    %v317 = vshrl.u32 %v316, 7
    %v318 = vsub.s32 1, %v317
    %v319 = vrot.slane %v305, %v318
    %321 = vbcast.lane.b32.xlu0 %v319, 256
    %v322 = vpop.permute.xlu0 %321
    %v323 = vld [vmem:[%s5] sm:$0xf]
    %v324 = vld [vmem:[%s5 + $0x4] sm:$0xf]
    %v325 = vunpack.c.l.bf16 %v323
    %v326 = vunpack.c.l.bf16 %v324
    %v327 = vmul.f32 %v315, %v325
    %v328 = vmul.f32 %v322, %v326
    %v329 = vsel %vm45, %v327, 0.0
    %v330 = vrot.slane %v329, 4
    %v331 = vadd.f32 %v329, %v330
    %v332 = vrot.slane %v331, 2
    %v333 = vadd.f32 %v331, %v332
    %v334 = vrot.slane %v333, 1
    %v335 = vadd.f32 %v333, %v334
    %v336 = vsel %vm45, %v328, 0.0
    %v337 = vrot.slane %v336, 4
    %v338 = vadd.f32 %v336, %v337
    %v339 = vrot.slane %v338, 2
    %v340 = vadd.f32 %v338, %v339
    %v341 = vrot.slane %v340, 1
    %v342 = vadd.f32 %v340, %v341
    %vm345 = vcmask 1041409
    %v346 = vsel %vm345, %v342, %v335
    %vm348 = vcmask 254976
    %349 = vst.msk [vmem:[#allocation2] sm:$0x3] %vm348, %v346
    // Predicated region
    $region34: #{attention_step.1} parent=1 // pred_check
      _
    $region35: #{attention_step.1} parent=1 // pred_check_branch
      %351 = sbr.rel (0) target = $region37
    $region36: #{attention_step.1} parent=1 // pred_region
      %s353 = ssub.s32 32, 32
      %354 = vsyncadd [#allocation3], %s353
      %s356 = sshll.u32 [#allocation2], 4
      %s357 = int_to_ptr.vmem [resolvable:$true] %s356
      %359 = dma.vmem_to_hbm [thread:$0]  %s357, 32, %s8, [#allocation3]
    $region37: #{attention_step.1} parent=1 // pred_fallthru
      _
    // Predicated region
    $region38: #{attention_step.1} parent=1 // pred_check
      _
    $region39: #{attention_step.1} parent=1 // pred_check_branch
      %361 = sbr.rel (0) target = $region41
    $region40: #{attention_step.1} parent=1 // pred_region
      %s363 = ssub.s32 32, 32
      %364 = vsyncadd [#allocation5], %s363
      %s366 = sshll.u32 [#allocation4], 4
      %s367 = int_to_ptr.vmem [resolvable:$true] %s366
      %369 = dma.vmem_to_hbm [thread:$0]  %s367, 32, %s9, [#allocation5]
    $region41: #{attention_step.1} parent=1 // pred_fallthru
      _
    // Predicated region
    $region42: #{attention_step.1} parent=1 // pred_check
      _
    $region43: #{attention_step.1} parent=1 // pred_check_branch
      %371 = sbr.rel (0) target = $region45
    $region44: #{attention_step.1} parent=1 // pred_region
      %s373 = ssub.s32 32, 32
      %374 = vsyncadd [#allocation5], %s373
      %s376 = sshll.u32 [#allocation6], 4
      %s377 = int_to_ptr.vmem [resolvable:$true] %s376
      %379 = dma.vmem_to_hbm [thread:$0]  %s377, 32, %s10, [#allocation5]
    $region45: #{attention_step.1} parent=1 // pred_fallthru
      _
    // Predicated region
    $region46: #{attention_step.1} parent=1 // pred_check
      _
    $region47: #{attention_step.1} parent=1 // pred_check_branch
      %381 = sbr.rel (0) target = $region49
    $region48: #{attention_step.1} parent=1 // pred_region
      %382 = dma.done [#allocation3], 32
    $region49: #{attention_step.1} parent=1 // pred_fallthru
      _
    // Predicated region
    $region50: #{attention_step.1} parent=1 // pred_check
      _
    $region51: #{attention_step.1} parent=1 // pred_check_branch
      %384 = sbr.rel (0) target = $region53
    $region52: #{attention_step.1} parent=1 // pred_region
      %385 = dma.done [#allocation5], 32
    $region53: #{attention_step.1} parent=1 // pred_fallthru
      _
    // Predicated region
    $region54: #{attention_step.1} parent=1 // pred_check
      _
    $region55: #{attention_step.1} parent=1 // pred_check_branch
      %387 = sbr.rel (0) target = $region57
    $region56: #{attention_step.1} parent=1 // pred_region
      %388 = dma.done [#allocation5], 32
    $region57: #{attention_step.1} parent=1 // pred_fallthru
      _
    %389 = vsyncpa [#allocation3], 1
    %390 = vsyncpa [#allocation5], 1

</llo_original>
